<compile_context>
chip_gen: v7x
topology: tpu7x:2x2x1
jax: 0.10.0
libtpu: 0.0.40
codegen_flags: <defaults>
</compile_context>

<pallas_src>
import jax
import jax.numpy as jnp
from jax import lax
from jax.experimental import pallas as pl
from jax.experimental.pallas import tpu as pltpu


def _bert_embed_kernel(ids_ref, item_ref, pos_ref, out_ref):
    """One grid step: embed N = TB*S token rows (TB batch rows, batch-major).

    ids_ref : (1, N, 1) int32  -- token ids for this block
    item_ref: (V, E)           -- item-embedding table, VMEM-resident
    pos_ref : (S, E)           -- positional rows 0..S-1, VMEM-resident
    out_ref : (N, E)           -- flattened (batch*seq, E) output slab
    """
    N, _E = out_ref.shape
    S = pos_ref.shape[0]
    V = item_ref.shape[0]
    TB = N // S  # batch rows in this block (static)

    ids = ids_ref[0]                                            # (N, 1) int32
    vocab = lax.broadcasted_iota(jnp.int32, (N, V), 1)          # (N, V) column ids
    onehot = (ids == vocab).astype(item_ref.dtype)              # (N, V) one-hot rows
    # MXU gather: one-hot @ table. Out-of-range ids produce an all-zero row (safe).
    gathered = jnp.dot(onehot, item_ref[...],
                       preferred_element_type=jnp.float32,
                       precision=lax.Precision.HIGHEST)         # (N, E) f32
    # Positional rows repeat every S tokens inside the batch-major block.
    pos = jnp.tile(pos_ref[...].astype(jnp.float32), (TB, 1))   # (N, E) f32
    out_ref[...] = (gathered + pos).astype(out_ref.dtype)


def _pick_batch_tile(batch, seq, embed, out_itemsize, target_bytes=1 << 20):
    """Batch rows per grid step: divides B, ~<= 1 MiB output slab per step,
    sublane-dense flattened out block, and >= 2 grid steps whenever B >= 2
    (so both TensorCores on v7x get work)."""
    best = 1
    for d in range(1, batch + 1):
        if batch % d:
            continue
        if (d * seq) % 8 != 0 and d * seq != batch * seq:
            continue  # keep the (d*seq, E) out block sublane-dense / layout-legal
        if d * seq * embed * out_itemsize > target_bytes:
            continue
        if batch >= 2 and batch // d < 2:
            continue  # keep >= 2 grid steps for megacore sharding
        best = max(best, d)
    if (best * seq) % 8 != 0 and best * seq != batch * seq:
        best = batch  # single full block is always layout-legal
    return best


def bert_embedding_forward(seq_ids, item_table, pos_table):
    """Equivalent of BertEmbedding.forward(sequence) in eval mode.

    seq_ids:    (B, S) integer token ids
    item_table: (items_size, E) item-embedding weights (row 0 = padding row)
    pos_table:  (max_len, E) positional-embedding weights
    returns:    (B, S, E)
    """
    B, S = seq_ids.shape
    V, E = item_table.shape
    max_len, E_pos = pos_table.shape
    assert E == E_pos, "embedding sizes of item and positional tables must match"
    assert S <= max_len, "sequence length exceeds positional table max_len"

    out_dtype = item_table.dtype
    out_itemsize = jnp.dtype(out_dtype).itemsize
    item_itemsize = jnp.dtype(item_table.dtype).itemsize
    pos_itemsize = jnp.dtype(pos_table.dtype).itemsize

    TB = _pick_batch_tile(B, S, E, out_itemsize)
    G = B // TB
    N = TB * S

    ids = seq_ids.astype(jnp.int32).reshape(G, N, 1)

    # Express pos_table[:S] via the BlockSpec when layout-legal; pre-slice only in the
    # rare case S % 8 != 0 and S != max_len.
    pos_in = pos_table if (S % 8 == 0 or S == max_len) else pos_table[:S]

    grid_spec = pltpu.PrefetchScalarGridSpec(
        num_scalar_prefetch=0,
        grid=(G,),
        in_specs=[
            pl.BlockSpec((1, N, 1), lambda i: (i, 0, 0)),   # ids for block i
            pl.BlockSpec((V, E), lambda i: (0, 0)),         # item table (resident)
            pl.BlockSpec((S, E), lambda i: (0, 0)),         # pos rows 0..S-1 (resident)
        ],
        out_specs=pl.BlockSpec((N, E), lambda i: (i, 0)),
    )

    # VMEM footprint: resident table + pos rows + (double-buffered) ids/out blocks.
    footprint = (2 * V * E * item_itemsize
                 + 2 * S * E * pos_itemsize
                 + 2 * N * 4
                 + 2 * N * E * out_itemsize)
    vmem_limit = int(min(max(footprint + (4 << 20), 32 << 20), 64 << 20))

    cost = pl.CostEstimate(
        flops=2 * B * S * V * E + B * S * E,      # one-hot MXU gather + pos add
        transcendentals=0,
        bytes_accessed=(B * S * 4                 # ids
                        + V * E * item_itemsize   # item table: one resident DMA
                        + S * E * pos_itemsize    # pos rows: one resident DMA
                        + B * S * E * out_itemsize),  # output writeback
    )

    out_flat = pl.pallas_call(
        _bert_embed_kernel,
        out_shape=jax.ShapeDtypeStruct((B * S, E), out_dtype),
        grid_spec=grid_spec,
        compiler_params=pltpu.CompilerParams(
            dimension_semantics=("parallel",),
            vmem_limit_bytes=vmem_limit,
        ),
        cost_estimate=cost,
    )(ids, item_table, pos_in)

    # Dropout is identity at inference time (nn.Dropout in eval mode).
    return out_flat.reshape(B, S, E)


if __name__ == "__main__":
    # Shapes implied by the module: vocab (items_size), embed_size, max_len, (B, S) ids.
    items_size, embed_size, max_len = 50, 128, 16
    B, S = 2, 8

    key = jax.random.PRNGKey(0)
    k1, k2, k3 = jax.random.split(key, 3)

    item_table = jax.random.normal(k1, (items_size, embed_size), dtype=jnp.float32)
    item_table = item_table.at[0].set(0.0)   # padding_idx=0 -> zero row, as nn.Embedding inits it
    pos_table = jax.random.normal(k2, (max_len, embed_size), dtype=jnp.float32)

    seq = jax.random.randint(k3, (B, S), 0, items_size, dtype=jnp.int32)

    out = bert_embedding_forward(seq, item_table, pos_table)
    out = jax.block_until_ready(out)

    # Pure-JAX reference check.
    expected = item_table[seq] + pos_table[:S][None, :, :]
    assert out.shape == (B, S, embed_size)
    assert jnp.allclose(out, expected, atol=1e-5), "mismatch vs reference"

    print("KERNEL_OK")
</pallas_src>

<mosaic_0001>
module attributes {stable_mosaic.version = 11 : i64} {
  func.func @_bert_embed_kernel(%arg0: i32, %arg1: memref<1x8x1xi32, #tpu.memory_space<vmem>>, %arg2: memref<50x128xf32, #tpu.memory_space<vmem>>, %arg3: memref<8x128xf32, #tpu.memory_space<vmem>>, %arg4: memref<8x128xf32, #tpu.memory_space<vmem>>) attributes {dimension_semantics = [#tpu.dimension_semantics<parallel>], iteration_bounds = array<i64: 2>, scalar_prefetch = 0 : i64, scratch_operands = 0 : i64, tpu.core_type = #tpu.core_type<tc>, window_params = [{transform_indices = @transform_0, window_bounds = array<i64: 1, 8, 1>}, {pipeline_mode = #tpu.pipeline_mode<synchronous>, transform_indices = @transform_1, window_bounds = array<i64: 50, 128>}, {transform_indices = @transform_2, window_bounds = array<i64: 8, 128>}, {transform_indices = @transform_3, window_bounds = array<i64: 8, 128>}]} {
    %c0 = arith.constant 0 : index
    %c0_0 = arith.constant 0 : index
    %c0_1 = arith.constant 0 : index
    %0 = vector.load %arg1[%c0, %c0_0, %c0_1] : memref<1x8x1xi32, #tpu.memory_space<vmem>>, vector<1x8x1xi32>
    %1 = vector.shape_cast %0 : vector<1x8x1xi32> to vector<8x1xi32>
    %2 = tpu.iota {dimensions = array<i32: 1>} : vector<8x50xi32>
    %3 = vector.broadcast %1 : vector<8x1xi32> to vector<8x50xi32>
    %4 = arith.cmpi eq, %3, %2 : vector<8x50xi32>
    %5 = arith.extui %4 : vector<8x50xi1> to vector<8x50xi32>
    %6 = arith.sitofp %5 : vector<8x50xi32> to vector<8x50xf32>
    %c0_2 = arith.constant 0 : index
    %c0_3 = arith.constant 0 : index
    %7 = vector.load %arg2[%c0_2, %c0_3] : memref<50x128xf32, #tpu.memory_space<vmem>>, vector<50x128xf32>
    %cst = arith.constant dense<0.000000e+00> : vector<8x128xf32>
    %8 = tpu.matmul %6, %7, %cst {dimension_numbers = #tpu.dot_dimension_numbers<[1], [0], [0], [1], [0, 0, 1, 1], [], []>, precision = #tpu.contract_precision<fp32>} : vector<8x50xf32>, vector<50x128xf32>, vector<8x128xf32> -> vector<8x128xf32>
    %c0_4 = arith.constant 0 : index
    %c0_5 = arith.constant 0 : index
    %9 = vector.load %arg3[%c0_4, %c0_5] : memref<8x128xf32, #tpu.memory_space<vmem>>, vector<8x128xf32>
    %10 = arith.addf %8, %9 : vector<8x128xf32>
    %c0_6 = arith.constant 0 : index
    %c0_7 = arith.constant 0 : index
    %11 = vector.load %arg4[%c0_6, %c0_7] : memref<8x128xf32, #tpu.memory_space<vmem>>, vector<8x128xf32>
    tpu.vector_store %arg4[%c0_6, %c0_7], %10 {strides = array<i32>} : memref<8x128xf32, #tpu.memory_space<vmem>>, vector<8x128xf32>,
    return
  }
  func.func @transform_0(%arg0: i32) -> (i32, i32, i32) {
    %c0_i32 = arith.constant 0 : i32
    %c0_i32_0 = arith.constant 0 : i32
    %c0_i32_1 = arith.constant 0 : i32
    return %arg0, %c0_i32, %c0_i32_0 : i32, i32, i32
  }
  func.func @transform_1(%arg0: i32) -> (i32, i32) {
    %c0_i32 = arith.constant 0 : i32
    %c0_i32_0 = arith.constant 0 : i32
    %c0_i32_1 = arith.constant 0 : i32
    return %c0_i32, %c0_i32_0 : i32, i32
  }
  func.func @transform_2(%arg0: i32) -> (i32, i32) {
    %c0_i32 = arith.constant 0 : i32
    %c0_i32_0 = arith.constant 0 : i32
    %c0_i32_1 = arith.constant 0 : i32
    return %c0_i32, %c0_i32_0 : i32, i32
  }
  func.func @transform_3(%arg0: i32) -> (i32, i32) {
    %c0_i32 = arith.constant 0 : i32
    %c0_i32_0 = arith.constant 0 : i32
    return %arg0, %c0_i32 : i32, i32
  }
}

</mosaic_0001>

<llo_original>
// kernel: tpu_custom_call.1
$region0: #{tpu_custom_call.1}
  #allocation0 [shape = 'u32[]', space=smem, size = 0x4, offset = 0x4, fixed_abs, tag = 'smem constant byte address 0x4 - core index']
  #allocation1 [shape = 'u32[144,128]{1,0:T(1,128)}', space=vmem, size = 0x12000, scoped, tag = 'internal scratch']
  %s0 = inlined_call_operand.vmem [shape: s32[2,8,1], index: 0, kind: input, shape index: {}]
  %s1 = inlined_call_operand.hbm [shape: f32[50,128], index: 1, kind: input, shape index: {}]
  %s2 = inlined_call_operand.vmem [shape: f32[16,128], index: 2, kind: input, shape index: {}]
  %s3 = inlined_call_operand.hbm [shape: f32[16,128], index: 3, kind: output, shape index: {}]
  %s4 = sld [smem:[#allocation0]]
  $region49: #{tpu_custom_call.1} parent=0
    _
  %s6 = ssub.s32 1, %s4
  %s7 = scalar_select 0, %s6, %s4
  $region1: #{tpu_custom_call.1} parent=0
    #allocation2 [shape = 'u8[28672]{0}', space=vmem, size = 0x7000, scoped, tag = 'input window, operand 1, single buffered']
    #allocation3 [shape = 's32[2]{0}', space=sflag, size = 0x8, scoped, tag = 'scoped memory for tpu_custom_call.1']
    #allocation4 [shape = 's32[2]{0}', space=sflag, size = 0x8, scoped, tag = 'scoped memory for tpu_custom_call.1']
    #allocation5 [shape = 'u8[8192]{0}', space=vmem, size = 0x2000, scoped, tag = 'output window, operand 0']
    %8 = vsyncpa [#allocation3], 0
    %9 = vsyncpa [#allocation4], 0
    %s10 = scalar_lea.sflag [#allocation4], 1
    %11 = vsyncpa %s10, 0
    loop: start=0, step=1, limit=4
    $region2: #{tpu_custom_call.1} parent=1 // loop_pre_header
      _
    $region3: #{tpu_custom_call.1} parent=1 // loop_header
      %s13 = sphi 0, %s17
      %p14 = scmp.ge.s32.totalorder %s13, 4
      %s23 = sphi 0, %s25
      %s26 = sphi 0, %s23
      %s27 = sphi 0, %s26
      %s43 = sphi 0, %s27
      %s47 = sphi 0, %s47
      %s49 = sphi 0, %s47
      %s50 = sphi 0, %s49
      %s64 = sphi 0, %s50
      %s68 = sphi 0, %s68
      %s70 = sphi 0, %s68
      %s71 = sphi 0, %s70
      %s85 = sphi 0, %s71
      %s91 = sphi 0, %s93
      %s94 = sphi 0, %s91
      %s95 = sphi 0, %s94
      %s111 = sphi 0, %s95
    $region4: #{tpu_custom_call.1} parent=1 // loop_header_branch
      %16 = sbr.rel (%p14) target = $region8
    $region5: #{tpu_custom_call.1} parent=1 // loop_body
      %s18 = ssub.s32 %s13, 1
      %s19 = ssub.s32 %s13, 2
      %s20 = sadd.s32 %s13, 1
      %s21 = ssub.s32 %s13, %s20
      %p22 = scmp.eq.s32.totalorder %s21, 0
      %s24 = sadd.s32 %s23, 1
      %s25 = scalar_select %p22, %s23, %s24
      %p28 = pneg %p22
      %p29 = scmp.eq.s32.totalorder %s13, 1
      %p30 = por %p28, %p29
      %p31 = scmp.ne.s32.totalorder %s23, %s26
      %p32 = scmp.eq.s32.totalorder %s13, 0
      %p33 = por %p31, %p32
      %p34 = scmp.ne.s32.totalorder %s23, %s26
      %p35 = scmp.eq.s32.totalorder %s18, 1
      %p36 = por %p34, %p35
      %p37 = scmp.ne.s32.totalorder %s26, %s27
      %p38 = scmp.eq.s32.totalorder %s18, 0
      %p39 = por %p37, %p38
      %p40 = scmp.ne.s32.totalorder %s26, %s27
      %p41 = scmp.eq.s32.totalorder %s19, 1
      %p42 = por %p40, %p41
      %p44 = scmp.ne.s32.totalorder %s27, %s43
      %p45 = scmp.eq.s32.totalorder %s19, 0
      %p46 = por %p44, %p45
      %s48 = sadd.s32 %s47, 1
      %p51 = scmp.eq.s32.totalorder %s13, 1
      %p52 = scmp.ne.s32.totalorder %s47, %s49
      %p53 = scmp.eq.s32.totalorder %s13, 0
      %p54 = por %p52, %p53
      %p55 = scmp.ne.s32.totalorder %s47, %s49
      %p56 = scmp.eq.s32.totalorder %s18, 1
      %p57 = por %p55, %p56
      %p58 = scmp.ne.s32.totalorder %s49, %s50
      %p59 = scmp.eq.s32.totalorder %s18, 0
      %p60 = por %p58, %p59
      %p61 = scmp.ne.s32.totalorder %s49, %s50
      %p62 = scmp.eq.s32.totalorder %s19, 1
      %p63 = por %p61, %p62
      %p65 = scmp.ne.s32.totalorder %s50, %s64
      %p66 = scmp.eq.s32.totalorder %s19, 0
      %p67 = por %p65, %p66
      %s69 = sadd.s32 %s68, 1
      %p72 = scmp.eq.s32.totalorder %s13, 1
      %p73 = scmp.ne.s32.totalorder %s68, %s70
      %p74 = scmp.eq.s32.totalorder %s13, 0
      %p75 = por %p73, %p74
      %p76 = scmp.ne.s32.totalorder %s68, %s70
      %p77 = scmp.eq.s32.totalorder %s18, 1
      %p78 = por %p76, %p77
      %p79 = scmp.ne.s32.totalorder %s70, %s71
      %p80 = scmp.eq.s32.totalorder %s18, 0
      %p81 = por %p79, %p80
      %p82 = scmp.ne.s32.totalorder %s70, %s71
      %p83 = scmp.eq.s32.totalorder %s19, 1
      %p84 = por %p82, %p83
      %p86 = scmp.ne.s32.totalorder %s71, %s85
      %p87 = scmp.eq.s32.totalorder %s19, 0
      %p88 = por %p86, %p87
      %s89 = ssub.s32 %s13, %s20
      %p90 = scmp.eq.s32.totalorder %s89, 0
      %s92 = sadd.s32 %s91, 1
      %s93 = scalar_select %p90, %s91, %s92
      %p96 = pneg %p90
      %p97 = scmp.eq.s32.totalorder %s13, 1
      %p98 = por %p96, %p97
      %p99 = scmp.ne.s32.totalorder %s91, %s94
      %p100 = scmp.eq.s32.totalorder %s13, 0
      %p101 = por %p99, %p100
      %p102 = scmp.ne.s32.totalorder %s91, %s94
      %p103 = scmp.eq.s32.totalorder %s18, 1
      %p104 = por %p102, %p103
      %p105 = scmp.ne.s32.totalorder %s94, %s95
      %p106 = scmp.eq.s32.totalorder %s18, 0
      %p107 = por %p105, %p106
      %p108 = scmp.ne.s32.totalorder %s94, %s95
      %p109 = scmp.eq.s32.totalorder %s19, 1
      %p110 = por %p108, %p109
      %p112 = scmp.ne.s32.totalorder %s95, %s111
      %p113 = scmp.eq.s32.totalorder %s19, 0
      %p114 = por %p112, %p113
      %p115 = scmp.le.s32.totalorder 1, %s13
      %p116 = scmp.lt.s32.totalorder %s13, 3
      %p117 = pnand %p115, %p116
      %p118 = pneg %p117
      // Predicated region
      $region9: #{tpu_custom_call.1} parent=5 // pred_check
        _
      $region10: #{tpu_custom_call.1} parent=5 // pred_check_branch
        %120 = sbr.rel (%p117) target = $region12
      $region11: #{tpu_custom_call.1} parent=5 // pred_region
        %s121 = ssub.s32 %s13, 1
        // Predicated region
        $region13: #{tpu_custom_call.1} parent=11 // pred_check
          %p122 = pneg %p60
        $region14: #{tpu_custom_call.1} parent=11 // pred_check_branch
          %124 = sbr.rel (%p122) target = $region16
        $region15: #{tpu_custom_call.1} parent=11 // pred_region
          %s126 = ssub.s32 896, 896
          %127 = vsyncadd [#allocation3], %s126
          %s128 = sshll.u32 [#allocation2], 4
          %s129 = int_to_ptr.vmem [resolvable:$true] %s128
          %134 = dma.hbm_to_vmem [thread:$0]  %s1, 896, %s129, [#allocation3], 128, 128, 8
        $region16: #{tpu_custom_call.1} parent=11 // pred_fallthru
          _
        // Predicated region
        $region17: #{tpu_custom_call.1} parent=11 // pred_check
          %p135 = pneg %p81
        $region18: #{tpu_custom_call.1} parent=11 // pred_check_branch
          %137 = sbr.rel (%p135) target = $region20
        $region19: #{tpu_custom_call.1} parent=11 // pred_region
          _
        $region20: #{tpu_custom_call.1} parent=11 // pred_fallthru
          _
      $region12: #{tpu_custom_call.1} parent=5 // pred_fallthru
        _
      %p138 = scmp.lt.s32.totalorder %s13, 2
      // Predicated region
      $region21: #{tpu_custom_call.1} parent=5 // pred_check
        %p139 = pneg %p138
      $region22: #{tpu_custom_call.1} parent=5 // pred_check_branch
        %141 = sbr.rel (%p139) target = $region24
      $region23: #{tpu_custom_call.1} parent=5 // pred_region
        // Predicated region
        $region25: #{tpu_custom_call.1} parent=23 // pred_check
          %p142 = pneg %p33
        $region26: #{tpu_custom_call.1} parent=23 // pred_check_branch
          %144 = sbr.rel (%p142) target = $region28
        $region27: #{tpu_custom_call.1} parent=23 // pred_region
          %p145 = scmp.lt.s32.totalorder %s13, 1
          %s146 = scalar_select %p145, %s13, 1
          %s147 = smul.addr %s146, 8
          %s148 = scalar_lea.vmem %s0, %s147
        $region28: #{tpu_custom_call.1} parent=23 // pred_fallthru
          _
      $region24: #{tpu_custom_call.1} parent=5 // pred_fallthru
        _
      %p149 = scmp.le.s32.totalorder 1, %s13
      %p150 = scmp.lt.s32.totalorder %s13, 3
      %p151 = pnand %p149, %p150
      %p152 = pneg %p151
      // Predicated region
      $region29: #{tpu_custom_call.1} parent=5 // pred_check
        _
      $region30: #{tpu_custom_call.1} parent=5 // pred_check_branch
        %154 = sbr.rel (%p151) target = $region32
      $region31: #{tpu_custom_call.1} parent=5 // pred_region
        %s155 = ssub.s32 %s13, 1
        // Predicated region
        $region33: #{tpu_custom_call.1} parent=31 // pred_check
          %p156 = pneg %p60
        $region34: #{tpu_custom_call.1} parent=31 // pred_check_branch
          %158 = sbr.rel (%p156) target = $region36
        $region35: #{tpu_custom_call.1} parent=31 // pred_region
          %159 = dma.done [#allocation3], 896
        $region36: #{tpu_custom_call.1} parent=31 // pred_fallthru
          _
        %p160 = scmp.lt.s32.totalorder %s18, 1
        %s161 = scalar_select %p160, %s18, 1
        %s162 = smul.addr %s161, 8
        %s163 = scalar_lea.vmem %s0, %s162
        %p164 = pneg %p39
        %p165 = pneg %p36
        %p166 = pneg %p60
        %p167 = pneg %p57
        %p168 = pneg %p81
        %p169 = pneg %p78
        %p170 = pneg %p107
        %p171 = pneg %p104
        %s172 = sand.u32 %s94, 1
        %s173 = scalar_lea.sflag [#allocation4], %s172
        %s174 = sand.u32 %s94, 1
        %s175 = smul.addr %s174, 8
        %s176 = scalar_lea.vmem [#allocation5], %s175
        %p177 = scmp.lt.s32.totalorder %s18, 1
        %s178 = scalar_select %p177, %s18, 1
        %s179 = smul.addr %s178, 8
        %s180 = scalar_lea.vmem %s0, %s179
        %v181 = vld [vmem:[%s180] sm:$0xff]
        %v182 = vlaneseq
        %v183 = vand.u32 %v182, 127
        %184 = vset.pattern.permute.xlu0 0
        %185 = vperm.xlu0 %184, %v181
        %v186 = vpop.permute.xlu0 %185
        %vm187 = vcmp.eq.s32.totalorder %v186, %v183
        %v188 = vsel %vm187, 1, 0
        %v189 = vcvt.s32.f32 %v188
        %v190 = vld [vmem:[#allocation2] sm:$0xff]
        %v191 = vld [vmem:[#allocation2 + $0x8] sm:$0xff]
        %v192 = vld [vmem:[#allocation2 + $0x10] sm:$0xff]
        %v193 = vld [vmem:[#allocation2 + $0x18] sm:$0xff]
        %v194 = vld [vmem:[#allocation2 + $0x20] sm:$0xff]
        %v195 = vld [vmem:[#allocation2 + $0x28] sm:$0xff]
        %v196 = vld [vmem:[#allocation2 + $0x30] sm:$0x3]
        %v197 = vld [vmem:[%s2] sm:$0xff]
        %vm198 = vcmask 408576
        %v200 = vsel %vm198, %v189, 0
        %vm202 = vcmask 1041408
        %v204 = vsel %vm202, %v196, 0
        %206 = vmatprep.subr.mxu0 0.0
        %v207 = vand.u32 %v190, 4294901760
        %208 = vmatpush1.msra.mxu0 %v207
        %209 = vmatprep.subr.mxu0 0.0
        %v210 = vand.u32 %v191, 4294901760
        %211 = vmatpush1.msra.mxu0 %v210
        %212 = vmatprep.subr.mxu0 0.0
        %v213 = vand.u32 %v192, 4294901760
        %214 = vmatpush1.msra.mxu0 %v213
        %215 = vmatprep.subr.mxu0 0.0
        %v216 = vand.u32 %v193, 4294901760
        %217 = vmatpush1.msra.mxu0 %v216
        %218 = vmatprep.subr.mxu0 0.0
        %v219 = vand.u32 %v194, 4294901760
        %220 = vmatpush1.msra.mxu0 %v219
        %221 = vmatprep.subr.mxu0 0.0
        %v222 = vand.u32 %v195, 4294901760
        %223 = vmatpush1.msra.mxu0 %v222
        %224 = vmatprep.subr.mxu0 0.0
        %v225 = vand.u32 %v204, 4294901760
        %226 = vmatpush1.msra.mxu0 %v225
        %227 = vmatprep.subr.mxu0 0.0
        %228 = vmatpush1.msra.mxu0 0.0
        %229 = vmatprep.subr.mxu0 0.0
        %230 = vmatpush1.msra.mxu0 0.0
        %231 = vmatprep.subr.mxu0 0.0
        %232 = vmatpush1.msra.mxu0 0.0
        %233 = vmatprep.subr.mxu0 0.0
        %234 = vmatpush1.msra.mxu0 0.0
        %235 = vmatprep.subr.mxu0 0.0
        %236 = vmatpush1.msra.mxu0 0.0
        %237 = vmatprep.subr.mxu0 0.0
        %238 = vmatpush1.msra.mxu0 0.0
        %239 = vmatprep.subr.mxu0 0.0
        %240 = vmatpush1.msra.mxu0 0.0
        %241 = vmatprep.subr.mxu0 0.0
        %242 = vmatpush1.msra.mxu0 0.0
        %243 = vmatprep.subr.mxu0 0.0
        %244 = vmatpush1.msra.mxu0 0.0
        %245 = vmatprep.subr.mxu0 0.0
        %246 = vmatpush1.msra.mxu0 0.0
        %247 = vmatprep.subr.mxu0 0.0
        %248 = vmatpush1.msra.mxu0 0.0
        %249 = vmatprep.subr.mxu0 0.0
        %250 = vmatpush1.msra.mxu0 0.0
        %251 = vmatprep.subr.mxu0 0.0
        %252 = vmatpush1.msra.mxu0 0.0
        %253 = vmatprep.subr.mxu0 0.0
        %254 = vmatpush1.msra.mxu0 0.0
        %255 = vmatprep.subr.mxu0 0.0
        %256 = vmatpush1.msra.mxu0 0.0
        %257 = vmatprep.subr.mxu0 0.0
        %258 = vmatpush1.msra.mxu0 0.0
        %259 = vmatprep.subr.mxu0 0.0
        %260 = vmatpush1.msra.mxu0 0.0
        %261 = vmatprep.subr.mxu0 0.0
        %262 = vmatpush1.msra.mxu0 0.0
        %263 = vmatprep.subr.mxu0 0.0
        %264 = vmatpush1.msra.mxu0 0.0
        %265 = vmatprep.subr.mxu0 0.0
        %266 = vmatpush1.msra.mxu0 0.0
        %267 = vmatprep.subr.mxu0 0.0
        %268 = vmatpush1.msra.mxu0 0.0
        %269 = vmatprep.subr.mxu0 0.0
        %270 = vmatpush1.msra.mxu0 0.0
        %271 = vmatprep.subr.mxu0 0.0
        %272 = vmatpush1.msra.mxu0 0.0
        %273 = vmatprep.subr.mxu0 0.0
        %274 = vmatpush1.msra.mxu0 0.0
        %275 = vmatprep.subr.mxu0 0.0
        %276 = vmatpush1.msra.mxu0 0.0
        %277 = vmatprep.mubr.f32.mxu0 0.0
        %v278 = vand.u32 %v200, 4294901760
        %v279 = vsub.f32 %v200, %v278
        %v280 = vand.u32 %v279, 4294901760
        %v281 = vsub.f32 %v279, %v280
        %v282 = vand.u32 %v281, 4294901760
        %283 = vmatmul.mubr.f32.gmra.mrb[0].mxu0 %v282
        %v284 = vpop.f32.mrb[0].mxu0
        %v285 = vadd.f32 %v197, %v284
        %v286 = vpop.f32.mrb[0].mxu0
        %287 = vdwg.mxu0
        %288 = vmatprep.subr.mxu0 0.0
        %v289 = vand.u32 %v190, 4294901760
        %v290 = vsub.f32 %v190, %v289
        %v291 = vand.u32 %v290, 4294901760
        %v292 = vsub.f32 %v290, %v291
        %v293 = vand.u32 %v292, 4294901760
        %294 = vmatpush1.msra.mxu0 %v293
        %295 = vmatprep.subr.mxu0 0.0
        %v296 = vand.u32 %v191, 4294901760
        %v297 = vsub.f32 %v191, %v296
        %v298 = vand.u32 %v297, 4294901760
        %v299 = vsub.f32 %v297, %v298
        %v300 = vand.u32 %v299, 4294901760
        %301 = vmatpush1.msra.mxu0 %v300
        %302 = vmatprep.subr.mxu0 0.0
        %v303 = vand.u32 %v192, 4294901760
        %v304 = vsub.f32 %v192, %v303
        %v305 = vand.u32 %v304, 4294901760
        %v306 = vsub.f32 %v304, %v305
        %v307 = vand.u32 %v306, 4294901760
        %308 = vmatpush1.msra.mxu0 %v307
        %309 = vmatprep.subr.mxu0 0.0
        %v310 = vand.u32 %v193, 4294901760
        %v311 = vsub.f32 %v193, %v310
        %v312 = vand.u32 %v311, 4294901760
        %v313 = vsub.f32 %v311, %v312
        %v314 = vand.u32 %v313, 4294901760
        %315 = vmatpush1.msra.mxu0 %v314
        %316 = vmatprep.subr.mxu0 0.0
        %v317 = vand.u32 %v194, 4294901760
        %v318 = vsub.f32 %v194, %v317
        %v319 = vand.u32 %v318, 4294901760
        %v320 = vsub.f32 %v318, %v319
        %v321 = vand.u32 %v320, 4294901760
        %322 = vmatpush1.msra.mxu0 %v321
        %323 = vmatprep.subr.mxu0 0.0
        %v324 = vand.u32 %v195, 4294901760
        %v325 = vsub.f32 %v195, %v324
        %v326 = vand.u32 %v325, 4294901760
        %v327 = vsub.f32 %v325, %v326
        %v328 = vand.u32 %v327, 4294901760
        %329 = vmatpush1.msra.mxu0 %v328
        %330 = vmatprep.subr.mxu0 0.0
        %v331 = vand.u32 %v204, 4294901760
        %v332 = vsub.f32 %v204, %v331
        %v333 = vand.u32 %v332, 4294901760
        %v334 = vsub.f32 %v332, %v333
        %v335 = vand.u32 %v334, 4294901760
        %336 = vmatpush1.msra.mxu0 %v335
        %337 = vmatprep.subr.mxu0 0.0
        %338 = vmatpush1.msra.mxu0 0.0
        %339 = vmatprep.subr.mxu0 0.0
        %340 = vmatpush1.msra.mxu0 0.0
        %341 = vmatprep.subr.mxu0 0.0
        %342 = vmatpush1.msra.mxu0 0.0
        %343 = vmatprep.subr.mxu0 0.0
        %344 = vmatpush1.msra.mxu0 0.0
        %345 = vmatprep.subr.mxu0 0.0
        %346 = vmatpush1.msra.mxu0 0.0
        %347 = vmatprep.subr.mxu0 0.0
        %348 = vmatpush1.msra.mxu0 0.0
        %349 = vmatprep.subr.mxu0 0.0
        %350 = vmatpush1.msra.mxu0 0.0
        %351 = vmatprep.subr.mxu0 0.0
        %352 = vmatpush1.msra.mxu0 0.0
        %353 = vmatprep.subr.mxu0 0.0
        %354 = vmatpush1.msra.mxu0 0.0
        %355 = vmatprep.subr.mxu0 0.0
        %356 = vmatpush1.msra.mxu0 0.0
        %357 = vmatprep.subr.mxu0 0.0
        %358 = vmatpush1.msra.mxu0 0.0
        %359 = vmatprep.subr.mxu0 0.0
        %360 = vmatpush1.msra.mxu0 0.0
        %361 = vmatprep.subr.mxu0 0.0
        %362 = vmatpush1.msra.mxu0 0.0
        %363 = vmatprep.subr.mxu0 0.0
        %364 = vmatpush1.msra.mxu0 0.0
        %365 = vmatprep.subr.mxu0 0.0
        %366 = vmatpush1.msra.mxu0 0.0
        %367 = vmatprep.subr.mxu0 0.0
        %368 = vmatpush1.msra.mxu0 0.0
        %369 = vmatprep.subr.mxu0 0.0
        %370 = vmatpush1.msra.mxu0 0.0
        %371 = vmatprep.subr.mxu0 0.0
        %372 = vmatpush1.msra.mxu0 0.0
        %373 = vmatprep.subr.mxu0 0.0
        %374 = vmatpush1.msra.mxu0 0.0
        %375 = vmatprep.subr.mxu0 0.0
        %376 = vmatpush1.msra.mxu0 0.0
        %377 = vmatprep.subr.mxu0 0.0
        %378 = vmatpush1.msra.mxu0 0.0
        %379 = vmatprep.subr.mxu0 0.0
        %380 = vmatpush1.msra.mxu0 0.0
        %381 = vmatprep.subr.mxu0 0.0
        %382 = vmatpush1.msra.mxu0 0.0
        %383 = vmatprep.subr.mxu0 0.0
        %384 = vmatpush1.msra.mxu0 0.0
        %385 = vmatprep.subr.mxu0 0.0
        %386 = vmatpush1.msra.mxu0 0.0
        %387 = vmatprep.mubr.f32.mxu0 0.0
        %v388 = vand.u32 %v200, 4294901760
        %389 = vmatmul.mubr.f32.gmra.mrb[0].mxu0 %v388
        %v390 = vpop.f32.mrb[0].mxu0
        %v391 = vadd.f32 %v285, %v390
        %v392 = vpop.f32.mrb[0].mxu0
        %393 = vdwg.mxu0
        %394 = vmatprep.subr.mxu0 0.0
        %v395 = vand.u32 %v190, 4294901760
        %v396 = vsub.f32 %v190, %v395
        %397 = vmatpush1.msra.mxu0 %v396
        %398 = vmatprep.subr.mxu0 0.0
        %v399 = vand.u32 %v191, 4294901760
        %v400 = vsub.f32 %v191, %v399
        %401 = vmatpush1.msra.mxu0 %v400
        %402 = vmatprep.subr.mxu0 0.0
        %v403 = vand.u32 %v192, 4294901760
        %v404 = vsub.f32 %v192, %v403
        %405 = vmatpush1.msra.mxu0 %v404
        %406 = vmatprep.subr.mxu0 0.0
        %v407 = vand.u32 %v193, 4294901760
        %v408 = vsub.f32 %v193, %v407
        %409 = vmatpush1.msra.mxu0 %v408
        %410 = vmatprep.subr.mxu0 0.0
        %v411 = vand.u32 %v194, 4294901760
        %v412 = vsub.f32 %v194, %v411
        %413 = vmatpush1.msra.mxu0 %v412
        %414 = vmatprep.subr.mxu0 0.0
        %v415 = vand.u32 %v195, 4294901760
        %v416 = vsub.f32 %v195, %v415
        %417 = vmatpush1.msra.mxu0 %v416
        %418 = vmatprep.subr.mxu0 0.0
        %v419 = vand.u32 %v204, 4294901760
        %v420 = vsub.f32 %v204, %v419
        %421 = vmatpush1.msra.mxu0 %v420
        %422 = vmatprep.subr.mxu0 0.0
        %423 = vmatpush1.msra.mxu0 0.0
        %424 = vmatprep.subr.mxu0 0.0
        %425 = vmatpush1.msra.mxu0 0.0
        %426 = vmatprep.subr.mxu0 0.0
        %427 = vmatpush1.msra.mxu0 0.0
        %428 = vmatprep.subr.mxu0 0.0
        %429 = vmatpush1.msra.mxu0 0.0
        %430 = vmatprep.subr.mxu0 0.0
        %431 = vmatpush1.msra.mxu0 0.0
        %432 = vmatprep.subr.mxu0 0.0
        %433 = vmatpush1.msra.mxu0 0.0
        %434 = vmatprep.subr.mxu0 0.0
        %435 = vmatpush1.msra.mxu0 0.0
        %436 = vmatprep.subr.mxu0 0.0
        %437 = vmatpush1.msra.mxu0 0.0
        %438 = vmatprep.subr.mxu0 0.0
        %439 = vmatpush1.msra.mxu0 0.0
        %440 = vmatprep.subr.mxu0 0.0
        %441 = vmatpush1.msra.mxu0 0.0
        %442 = vmatprep.subr.mxu0 0.0
        %443 = vmatpush1.msra.mxu0 0.0
        %444 = vmatprep.subr.mxu0 0.0
        %445 = vmatpush1.msra.mxu0 0.0
        %446 = vmatprep.subr.mxu0 0.0
        %447 = vmatpush1.msra.mxu0 0.0
        %448 = vmatprep.subr.mxu0 0.0
        %449 = vmatpush1.msra.mxu0 0.0
        %450 = vmatprep.subr.mxu0 0.0
        %451 = vmatpush1.msra.mxu0 0.0
        %452 = vmatprep.subr.mxu0 0.0
        %453 = vmatpush1.msra.mxu0 0.0
        %454 = vmatprep.subr.mxu0 0.0
        %455 = vmatpush1.msra.mxu0 0.0
        %456 = vmatprep.subr.mxu0 0.0
        %457 = vmatpush1.msra.mxu0 0.0
        %458 = vmatprep.subr.mxu0 0.0
        %459 = vmatpush1.msra.mxu0 0.0
        %460 = vmatprep.subr.mxu0 0.0
        %461 = vmatpush1.msra.mxu0 0.0
        %462 = vmatprep.subr.mxu0 0.0
        %463 = vmatpush1.msra.mxu0 0.0
        %464 = vmatprep.subr.mxu0 0.0
        %465 = vmatpush1.msra.mxu0 0.0
        %466 = vmatprep.subr.mxu0 0.0
        %467 = vmatpush1.msra.mxu0 0.0
        %468 = vmatprep.subr.mxu0 0.0
        %469 = vmatpush1.msra.mxu0 0.0
        %470 = vmatprep.subr.mxu0 0.0
        %471 = vmatpush1.msra.mxu0 0.0
        %472 = vmatprep.mubr.f32.mxu0 0.0
        %v473 = vand.u32 %v200, 4294901760
        %v474 = vsub.f32 %v200, %v473
        %475 = vmatmul.mubr.f32.gmra.mrb[0].mxu0 %v474
        %v476 = vpop.f32.mrb[0].mxu0
        %v477 = vadd.f32 %v391, %v476
        %v478 = vpop.f32.mrb[0].mxu0
        %479 = vdwg.mxu0
        %480 = vmatprep.subr.mxu0 0.0
        %v481 = vand.u32 %v190, 4294901760
        %482 = vmatpush1.msra.mxu0 %v481
        %483 = vmatprep.subr.mxu0 0.0
        %v484 = vand.u32 %v191, 4294901760
        %485 = vmatpush1.msra.mxu0 %v484
        %486 = vmatprep.subr.mxu0 0.0
        %v487 = vand.u32 %v192, 4294901760
        %488 = vmatpush1.msra.mxu0 %v487
        %489 = vmatprep.subr.mxu0 0.0
        %v490 = vand.u32 %v193, 4294901760
        %491 = vmatpush1.msra.mxu0 %v490
        %492 = vmatprep.subr.mxu0 0.0
        %v493 = vand.u32 %v194, 4294901760
        %494 = vmatpush1.msra.mxu0 %v493
        %495 = vmatprep.subr.mxu0 0.0
        %v496 = vand.u32 %v195, 4294901760
        %497 = vmatpush1.msra.mxu0 %v496
        %498 = vmatprep.subr.mxu0 0.0
        %v499 = vand.u32 %v204, 4294901760
        %500 = vmatpush1.msra.mxu0 %v499
        %501 = vmatprep.subr.mxu0 0.0
        %502 = vmatpush1.msra.mxu0 0.0
        %503 = vmatprep.subr.mxu0 0.0
        %504 = vmatpush1.msra.mxu0 0.0
        %505 = vmatprep.subr.mxu0 0.0
        %506 = vmatpush1.msra.mxu0 0.0
        %507 = vmatprep.subr.mxu0 0.0
        %508 = vmatpush1.msra.mxu0 0.0
        %509 = vmatprep.subr.mxu0 0.0
        %510 = vmatpush1.msra.mxu0 0.0
        %511 = vmatprep.subr.mxu0 0.0
        %512 = vmatpush1.msra.mxu0 0.0
        %513 = vmatprep.subr.mxu0 0.0
        %514 = vmatpush1.msra.mxu0 0.0
        %515 = vmatprep.subr.mxu0 0.0
        %516 = vmatpush1.msra.mxu0 0.0
        %517 = vmatprep.subr.mxu0 0.0
        %518 = vmatpush1.msra.mxu0 0.0
        %519 = vmatprep.subr.mxu0 0.0
        %520 = vmatpush1.msra.mxu0 0.0
        %521 = vmatprep.subr.mxu0 0.0
        %522 = vmatpush1.msra.mxu0 0.0
        %523 = vmatprep.subr.mxu0 0.0
        %524 = vmatpush1.msra.mxu0 0.0
        %525 = vmatprep.subr.mxu0 0.0
        %526 = vmatpush1.msra.mxu0 0.0
        %527 = vmatprep.subr.mxu0 0.0
        %528 = vmatpush1.msra.mxu0 0.0
        %529 = vmatprep.subr.mxu0 0.0
        %530 = vmatpush1.msra.mxu0 0.0
        %531 = vmatprep.subr.mxu0 0.0
        %532 = vmatpush1.msra.mxu0 0.0
        %533 = vmatprep.subr.mxu0 0.0
        %534 = vmatpush1.msra.mxu0 0.0
        %535 = vmatprep.subr.mxu0 0.0
        %536 = vmatpush1.msra.mxu0 0.0
        %537 = vmatprep.subr.mxu0 0.0
        %538 = vmatpush1.msra.mxu0 0.0
        %539 = vmatprep.subr.mxu0 0.0
        %540 = vmatpush1.msra.mxu0 0.0
        %541 = vmatprep.subr.mxu0 0.0
        %542 = vmatpush1.msra.mxu0 0.0
        %543 = vmatprep.subr.mxu0 0.0
        %544 = vmatpush1.msra.mxu0 0.0
        %545 = vmatprep.subr.mxu0 0.0
        %546 = vmatpush1.msra.mxu0 0.0
        %547 = vmatprep.subr.mxu0 0.0
        %548 = vmatpush1.msra.mxu0 0.0
        %549 = vmatprep.subr.mxu0 0.0
        %550 = vmatpush1.msra.mxu0 0.0
        %551 = vmatprep.mubr.f32.mxu0 0.0
        %v552 = vand.u32 %v200, 4294901760
        %v553 = vsub.f32 %v200, %v552
        %v554 = vand.u32 %v553, 4294901760
        %555 = vmatmul.mubr.f32.gmra.mrb[0].mxu0 %v554
        %v556 = vpop.f32.mrb[0].mxu0
        %v557 = vadd.f32 %v477, %v556
        %v558 = vpop.f32.mrb[0].mxu0
        %559 = vdwg.mxu0
        %560 = vmatprep.subr.mxu0 0.0
        %v561 = vand.u32 %v190, 4294901760
        %v562 = vsub.f32 %v190, %v561
        %v563 = vand.u32 %v562, 4294901760
        %564 = vmatpush1.msra.mxu0 %v563
        %565 = vmatprep.subr.mxu0 0.0
        %v566 = vand.u32 %v191, 4294901760
        %v567 = vsub.f32 %v191, %v566
        %v568 = vand.u32 %v567, 4294901760
        %569 = vmatpush1.msra.mxu0 %v568
        %570 = vmatprep.subr.mxu0 0.0
        %v571 = vand.u32 %v192, 4294901760
        %v572 = vsub.f32 %v192, %v571
        %v573 = vand.u32 %v572, 4294901760
        %574 = vmatpush1.msra.mxu0 %v573
        %575 = vmatprep.subr.mxu0 0.0
        %v576 = vand.u32 %v193, 4294901760
        %v577 = vsub.f32 %v193, %v576
        %v578 = vand.u32 %v577, 4294901760
        %579 = vmatpush1.msra.mxu0 %v578
        %580 = vmatprep.subr.mxu0 0.0
        %v581 = vand.u32 %v194, 4294901760
        %v582 = vsub.f32 %v194, %v581
        %v583 = vand.u32 %v582, 4294901760
        %584 = vmatpush1.msra.mxu0 %v583
        %585 = vmatprep.subr.mxu0 0.0
        %v586 = vand.u32 %v195, 4294901760
        %v587 = vsub.f32 %v195, %v586
        %v588 = vand.u32 %v587, 4294901760
        %589 = vmatpush1.msra.mxu0 %v588
        %590 = vmatprep.subr.mxu0 0.0
        %v591 = vand.u32 %v204, 4294901760
        %v592 = vsub.f32 %v204, %v591
        %v593 = vand.u32 %v592, 4294901760
        %594 = vmatpush1.msra.mxu0 %v593
        %595 = vmatprep.subr.mxu0 0.0
        %596 = vmatpush1.msra.mxu0 0.0
        %597 = vmatprep.subr.mxu0 0.0
        %598 = vmatpush1.msra.mxu0 0.0
        %599 = vmatprep.subr.mxu0 0.0
        %600 = vmatpush1.msra.mxu0 0.0
        %601 = vmatprep.subr.mxu0 0.0
        %602 = vmatpush1.msra.mxu0 0.0
        %603 = vmatprep.subr.mxu0 0.0
        %604 = vmatpush1.msra.mxu0 0.0
        %605 = vmatprep.subr.mxu0 0.0
        %606 = vmatpush1.msra.mxu0 0.0
        %607 = vmatprep.subr.mxu0 0.0
        %608 = vmatpush1.msra.mxu0 0.0
        %609 = vmatprep.subr.mxu0 0.0
        %610 = vmatpush1.msra.mxu0 0.0
        %611 = vmatprep.subr.mxu0 0.0
        %612 = vmatpush1.msra.mxu0 0.0
        %613 = vmatprep.subr.mxu0 0.0
        %614 = vmatpush1.msra.mxu0 0.0
        %615 = vmatprep.subr.mxu0 0.0
        %616 = vmatpush1.msra.mxu0 0.0
        %617 = vmatprep.subr.mxu0 0.0
        %618 = vmatpush1.msra.mxu0 0.0
        %619 = vmatprep.subr.mxu0 0.0
        %620 = vmatpush1.msra.mxu0 0.0
        %621 = vmatprep.subr.mxu0 0.0
        %622 = vmatpush1.msra.mxu0 0.0
        %623 = vmatprep.subr.mxu0 0.0
        %624 = vmatpush1.msra.mxu0 0.0
        %625 = vmatprep.subr.mxu0 0.0
        %626 = vmatpush1.msra.mxu0 0.0
        %627 = vmatprep.subr.mxu0 0.0
        %628 = vmatpush1.msra.mxu0 0.0
        %629 = vmatprep.subr.mxu0 0.0
        %630 = vmatpush1.msra.mxu0 0.0
        %631 = vmatprep.subr.mxu0 0.0
        %632 = vmatpush1.msra.mxu0 0.0
        %633 = vmatprep.subr.mxu0 0.0
        %634 = vmatpush1.msra.mxu0 0.0
        %635 = vmatprep.subr.mxu0 0.0
        %636 = vmatpush1.msra.mxu0 0.0
        %637 = vmatprep.subr.mxu0 0.0
        %638 = vmatpush1.msra.mxu0 0.0
        %639 = vmatprep.subr.mxu0 0.0
        %640 = vmatpush1.msra.mxu0 0.0
        %641 = vmatprep.subr.mxu0 0.0
        %642 = vmatpush1.msra.mxu0 0.0
        %643 = vmatprep.subr.mxu0 0.0
        %644 = vmatpush1.msra.mxu0 0.0
        %645 = vmatprep.mubr.f32.mxu0 0.0
        %v646 = vand.u32 %v200, 4294901760
        %647 = vmatmul.mubr.f32.gmra.mrb[0].mxu0 %v646
        %v648 = vpop.f32.mrb[0].mxu0
        %v649 = vadd.f32 %v557, %v648
        %v650 = vpop.f32.mrb[0].mxu0
        %651 = vdwg.mxu0
        %652 = vmatprep.subr.mxu0 0.0
        %v653 = vand.u32 %v190, 4294901760
        %654 = vmatpush1.msra.mxu0 %v653
        %655 = vmatprep.subr.mxu0 0.0
        %v656 = vand.u32 %v191, 4294901760
        %657 = vmatpush1.msra.mxu0 %v656
        %658 = vmatprep.subr.mxu0 0.0
        %v659 = vand.u32 %v192, 4294901760
        %660 = vmatpush1.msra.mxu0 %v659
        %661 = vmatprep.subr.mxu0 0.0
        %v662 = vand.u32 %v193, 4294901760
        %663 = vmatpush1.msra.mxu0 %v662
        %664 = vmatprep.subr.mxu0 0.0
        %v665 = vand.u32 %v194, 4294901760
        %666 = vmatpush1.msra.mxu0 %v665
        %667 = vmatprep.subr.mxu0 0.0
        %v668 = vand.u32 %v195, 4294901760
        %669 = vmatpush1.msra.mxu0 %v668
        %670 = vmatprep.subr.mxu0 0.0
        %v671 = vand.u32 %v204, 4294901760
        %672 = vmatpush1.msra.mxu0 %v671
        %673 = vmatprep.subr.mxu0 0.0
        %674 = vmatpush1.msra.mxu0 0.0
        %675 = vmatprep.subr.mxu0 0.0
        %676 = vmatpush1.msra.mxu0 0.0
        %677 = vmatprep.subr.mxu0 0.0
        %678 = vmatpush1.msra.mxu0 0.0
        %679 = vmatprep.subr.mxu0 0.0
        %680 = vmatpush1.msra.mxu0 0.0
        %681 = vmatprep.subr.mxu0 0.0
        %682 = vmatpush1.msra.mxu0 0.0
        %683 = vmatprep.subr.mxu0 0.0
        %684 = vmatpush1.msra.mxu0 0.0
        %685 = vmatprep.subr.mxu0 0.0
        %686 = vmatpush1.msra.mxu0 0.0
        %687 = vmatprep.subr.mxu0 0.0
        %688 = vmatpush1.msra.mxu0 0.0
        %689 = vmatprep.subr.mxu0 0.0
        %690 = vmatpush1.msra.mxu0 0.0
        %691 = vmatprep.subr.mxu0 0.0
        %692 = vmatpush1.msra.mxu0 0.0
        %693 = vmatprep.subr.mxu0 0.0
        %694 = vmatpush1.msra.mxu0 0.0
        %695 = vmatprep.subr.mxu0 0.0
        %696 = vmatpush1.msra.mxu0 0.0
        %697 = vmatprep.subr.mxu0 0.0
        %698 = vmatpush1.msra.mxu0 0.0
        %699 = vmatprep.subr.mxu0 0.0
        %700 = vmatpush1.msra.mxu0 0.0
        %701 = vmatprep.subr.mxu0 0.0
        %702 = vmatpush1.msra.mxu0 0.0
        %703 = vmatprep.subr.mxu0 0.0
        %704 = vmatpush1.msra.mxu0 0.0
        %705 = vmatprep.subr.mxu0 0.0
        %706 = vmatpush1.msra.mxu0 0.0
        %707 = vmatprep.subr.mxu0 0.0
        %708 = vmatpush1.msra.mxu0 0.0
        %709 = vmatprep.subr.mxu0 0.0
        %710 = vmatpush1.msra.mxu0 0.0
        %711 = vmatprep.subr.mxu0 0.0
        %712 = vmatpush1.msra.mxu0 0.0
        %713 = vmatprep.subr.mxu0 0.0
        %714 = vmatpush1.msra.mxu0 0.0
        %715 = vmatprep.subr.mxu0 0.0
        %716 = vmatpush1.msra.mxu0 0.0
        %717 = vmatprep.subr.mxu0 0.0
        %718 = vmatpush1.msra.mxu0 0.0
        %719 = vmatprep.subr.mxu0 0.0
        %720 = vmatpush1.msra.mxu0 0.0
        %721 = vmatprep.subr.mxu0 0.0
        %722 = vmatpush1.msra.mxu0 0.0
        %723 = vmatprep.mubr.f32.mxu0 0.0
        %v724 = vand.u32 %v200, 4294901760
        %725 = vmatmul.mubr.f32.gmra.mrb[0].mxu0 %v724
        %v726 = vpop.f32.mrb[0].mxu0
        %v727 = vadd.f32 %v649, %v726
        %v728 = vpop.f32.mrb[0].mxu0
        %729 = vdwg.mxu0
        %730 = vst [vmem:[%s176] sm:$0xff] %v727
        %s731 = sand.u32 %s94, 1
        %s732 = scalar_lea.sflag [#allocation4], %s731
        %s733 = sand.u32 %s94, 1
        %s734 = smul.addr %s733, 8
        %s735 = scalar_lea.vmem [#allocation5], %s734
        // Predicated region
        $region37: #{tpu_custom_call.1} parent=31 // pred_check
          %p736 = pneg %p104
        $region38: #{tpu_custom_call.1} parent=31 // pred_check_branch
          %738 = sbr.rel (%p736) target = $region40
        $region39: #{tpu_custom_call.1} parent=31 // pred_region
          %s740 = ssub.s32 128, 128
          %741 = vsyncadd %s732, %s740
          %s742 = smul.addr %s18, 128
          %s743 = scalar_lea.hbm %s3, %s742
          %s745 = sshll.u32 %s735, 4
          %s746 = int_to_ptr.vmem [resolvable:$true] %s745
          %748 = dma.vmem_to_hbm [thread:$0]  %s746, 128, %s743, %s732
        $region40: #{tpu_custom_call.1} parent=31 // pred_fallthru
          _
      $region32: #{tpu_custom_call.1} parent=5 // pred_fallthru
        _
      %p749 = scmp.le.s32.totalorder 2, %s13
      // Predicated region
      $region41: #{tpu_custom_call.1} parent=5 // pred_check
        %p750 = pneg %p749
      $region42: #{tpu_custom_call.1} parent=5 // pred_check_branch
        %752 = sbr.rel (%p750) target = $region44
      $region43: #{tpu_custom_call.1} parent=5 // pred_region
        %s753 = ssub.s32 %s13, 2
        // Predicated region
        $region45: #{tpu_custom_call.1} parent=43 // pred_check
          %p754 = pneg %p110
        $region46: #{tpu_custom_call.1} parent=43 // pred_check_branch
          %756 = sbr.rel (%p754) target = $region48
        $region47: #{tpu_custom_call.1} parent=43 // pred_region
          %s757 = sand.u32 %s95, 1
          %s758 = scalar_lea.sflag [#allocation4], %s757
          %s759 = sand.u32 %s95, 1
          %s760 = smul.addr %s759, 8
          %s761 = scalar_lea.vmem [#allocation5], %s760
          %762 = dma.done %s758, 128
        $region48: #{tpu_custom_call.1} parent=43 // pred_fallthru
          _
      $region44: #{tpu_custom_call.1} parent=5 // pred_fallthru
        _
    $region6: #{tpu_custom_call.1} parent=1 // loop_footer
      %s17 = sadd.s32 1, %s13
    $region7: #{tpu_custom_call.1} parent=1 // loop_footer_branch
      %12 = sbr.rel target = $region3
    $region8: #{tpu_custom_call.1} parent=1 // loop_exit
      _
    %763 = vsyncpa [#allocation3], 1
    %s764 = scalar_lea.sflag [#allocation3], 1
    %765 = vsyncpa %s764, 1
    %766 = vsyncpa [#allocation4], 1
    %s767 = scalar_lea.sflag [#allocation4], 1
    %768 = vsyncpa %s767, 1

</llo_original>
